<compile_context>
chip_gen: v5e
topology: v5e:2x2
jax: 0.10.0
libtpu: 0.0.40
codegen_flags: <defaults>
</compile_context>

<pallas_src>
import jax
import jax.numpy as jnp
from jax.experimental import pallas as pl
from jax.experimental.pallas import tpu as pltpu


def _daf_kernel(x_ref, r_ref, o_ref):
    # Pure VPU elementwise add on a lane-dense (block_rows, 128) tile.
    o_ref[...] = x_ref[...] + r_ref[...]


_LANE = 128
_BLOCK_BYTES = 2 * 1024 * 1024       # target bytes per operand block (~2 MiB)
_MIN_BLOCK_BYTES = 256 * 1024        # never shrink blocks below this
_MIN_GRID = 8                        # >=4 steps per TC on v7x, fills pipeline
_BYPASS_BYTES = 1 * 1024 * 1024      # below this, XLA's fused add wins


def _sublane_multiple(dtype):
    """Packed-sublane row multiple: 8 for 32-bit, 16 for bf16, 32 for int8."""
    itemsize = jnp.dtype(dtype).itemsize
    if itemsize >= 4:
        return 8
    return 8 * (4 // itemsize)


def _round_up(v, m):
    return ((v + m - 1) // m) * m


def daf_forward(x, residual):
    """DirectAddFuse forward: returns x + residual."""
    assert x.shape == residual.shape, "x and residual must have the same shape"
    assert x.dtype == residual.dtype, "x and residual must have the same dtype"
    orig_shape = x.shape
    dtype = x.dtype
    itemsize = jnp.dtype(dtype).itemsize
    total = int(x.size)
    total_bytes = total * itemsize

    # Bypass paths: (a) tiny tensors where pallas_call fixed overhead dominates,
    # (b) sizes not divisible by 128, where any repack to a lane-dense view
    # would cost extra full HBM passes — the fused XLA add is already optimal.
    if total_bytes < _BYPASS_BYTES or total % _LANE != 0:
        return x + residual

    rows = total // _LANE
    sub = _sublane_multiple(dtype)

    # Pick the grid size: blocks <= ~2 MiB, >= ~256 KiB, >= 8 steps when the
    # data is big enough, and an even step count for the 2-TC split on v7x.
    nb = max(pl.cdiv(total_bytes, _BLOCK_BYTES), _MIN_GRID)
    nb = min(nb, max(1, total_bytes // _MIN_BLOCK_BYTES))
    if nb > 1 and nb % 2:
        nb += 1
    block_rows = max(_round_up(pl.cdiv(rows, nb), sub), sub)
    num_blocks = pl.cdiv(rows, block_rows)

    # Zero-copy lane-dense views.
    x2 = x.reshape(rows, _LANE)
    r2 = residual.reshape(rows, _LANE)

    spec = pl.BlockSpec((block_rows, _LANE), lambda i: (i, 0))

    out2 = pl.pallas_call(
        _daf_kernel,
        out_shape=jax.ShapeDtypeStruct((rows, _LANE), dtype),
        grid=(num_blocks,),
        in_specs=[spec, spec],
        out_specs=spec,
        compiler_params=pltpu.CompilerParams(
            dimension_semantics=("parallel",)),
        cost_estimate=pl.CostEstimate(
            flops=total, transcendentals=0, bytes_accessed=3 * total_bytes),
    )(x2, r2)

    return out2.reshape(orig_shape)


def _reference(x, residual):
    return x + residual


def _check(shape, dtype, key, exact=True):
    kx, kr = jax.random.split(key, 2)
    x = jax.random.normal(kx, shape, jnp.float32).astype(dtype)
    r = jax.random.normal(kr, shape, jnp.float32).astype(dtype)
    out = jax.block_until_ready(daf_forward(x, r))
    ref = _reference(x, r)
    assert out.shape == shape and out.dtype == dtype
    if exact:
        assert float(jnp.max(jnp.abs((out - ref).astype(jnp.float32)))) == 0.0, \
            f"Pallas kernel mismatch vs JAX reference for {shape} {dtype}"
    else:
        assert jnp.allclose(out.astype(jnp.float32), ref.astype(jnp.float32),
                            atol=1e-2, rtol=1e-2), \
            f"Pallas kernel mismatch vs JAX reference for {shape} {dtype}"


if __name__ == "__main__":
    key = jax.random.PRNGKey(0)
    k0, k1, k2, k3 = jax.random.split(key, 4)

    # Tiny shape typical of the fusion module's usage (N, C, L): bypass path.
    _check((2, 64, 16), jnp.float32, k0)

    # Aligned, exactly-divisible multi-block Pallas path (8 grid steps).
    _check((2, 64, 4096), jnp.float32, k1)

    # Aligned but rows (2052) not a multiple of block_rows: masked last block.
    _check((3, 64, 1368), jnp.float32, k2)

    # bf16 path exercising dtype-aware sublane rounding (16-row multiple).
    _check((2, 64, 4096), jnp.bfloat16, k3, exact=False)

    print("KERNEL_OK")
</pallas_src>

<mosaic_0001>
module attributes {stable_mosaic.version = 11 : i64} {
  func.func @_daf_kernel(%arg0: i32, %arg1: memref<512x128xf32, #tpu.memory_space<vmem>>, %arg2: memref<512x128xf32, #tpu.memory_space<vmem>>, %arg3: memref<512x128xf32, #tpu.memory_space<vmem>>) attributes {dimension_semantics = [#tpu.dimension_semantics<parallel>], iteration_bounds = array<i64: 8>, scalar_prefetch = 0 : i64, scratch_operands = 0 : i64, tpu.core_type = #tpu.core_type<tc>, window_params = [{transform_indices = @transform_0, window_bounds = array<i64: 512, 128>}, {transform_indices = @transform_1, window_bounds = array<i64: 512, 128>}, {transform_indices = @transform_2, window_bounds = array<i64: 512, 128>}]} {
    %c0 = arith.constant 0 : index
    %c0_0 = arith.constant 0 : index
    %0 = vector.load %arg1[%c0, %c0_0] : memref<512x128xf32, #tpu.memory_space<vmem>>, vector<512x128xf32>
    %c0_1 = arith.constant 0 : index
    %c0_2 = arith.constant 0 : index
    %1 = vector.load %arg2[%c0_1, %c0_2] : memref<512x128xf32, #tpu.memory_space<vmem>>, vector<512x128xf32>
    %2 = arith.addf %0, %1 : vector<512x128xf32>
    %c0_3 = arith.constant 0 : index
    %c0_4 = arith.constant 0 : index
    %3 = vector.load %arg3[%c0_3, %c0_4] : memref<512x128xf32, #tpu.memory_space<vmem>>, vector<512x128xf32>
    tpu.vector_store %arg3[%c0_3, %c0_4], %2 {strides = array<i32>} : memref<512x128xf32, #tpu.memory_space<vmem>>, vector<512x128xf32>,
    return
  }
  func.func @transform_0(%arg0: i32) -> (i32, i32) {
    %c0_i32 = arith.constant 0 : i32
    %c0_i32_0 = arith.constant 0 : i32
    return %arg0, %c0_i32 : i32, i32
  }
  func.func @transform_1(%arg0: i32) -> (i32, i32) {
    %c0_i32 = arith.constant 0 : i32
    %c0_i32_0 = arith.constant 0 : i32
    return %arg0, %c0_i32 : i32, i32
  }
  func.func @transform_2(%arg0: i32) -> (i32, i32) {
    %c0_i32 = arith.constant 0 : i32
    %c0_i32_0 = arith.constant 0 : i32
    return %arg0, %c0_i32 : i32, i32
  }
}

</mosaic_0001>

<llo_original>
// kernel: tpu_custom_call.1
$region0: #{tpu_custom_call.1}
  #allocation0 [shape = 'u32[]', space=smem, size = 0x4, offset = 0x4, fixed_abs, tag = 'smem constant byte address 0x4 - core index']
  #allocation1 [shape = 'u32[72,128]{1,0:T(1,128)}', space=vmem, size = 0x9000, scoped, tag = 'internal scratch']
  %s0 = inlined_call_operand.hbm [shape: f32[4096,128], index: 0, kind: input, shape index: {}]
  %s1 = inlined_call_operand.hbm [shape: f32[4096,128], index: 1, kind: input, shape index: {}]
  %s2 = inlined_call_operand.hbm [shape: f32[4096,128], index: 2, kind: output, shape index: {}]
  %s3 = sld [smem:[#allocation0]]
  $region49: #{tpu_custom_call.1} parent=0
    _
  %s5 = ssub.s32 1, %s3
  %s6 = scalar_select 0, %s5, %s3
  $region1: #{tpu_custom_call.1} parent=0
    #allocation2 [shape = 'u8[524288]{0}', space=vmem, size = 0x80000, scoped, tag = 'input window, operand 0']
    #allocation3 [shape = 's32[2]{0}', space=sflag, size = 0x8, scoped, tag = 'scoped memory for tpu_custom_call.1']
    #allocation4 [shape = 's32[2]{0}', space=sflag, size = 0x8, scoped, tag = 'scoped memory for tpu_custom_call.1']
    #allocation5 [shape = 'u8[524288]{0}', space=vmem, size = 0x80000, scoped, tag = 'input window, operand 1']
    #allocation6 [shape = 's32[2]{0}', space=sflag, size = 0x8, scoped, tag = 'scoped memory for tpu_custom_call.1']
    #allocation7 [shape = 'u8[524288]{0}', space=vmem, size = 0x80000, scoped, tag = 'output window, operand 0']
    %7 = vsyncpa [#allocation3], 0
    %s8 = scalar_lea.sflag [#allocation3], 1
    %9 = vsyncpa %s8, 0
    %10 = vsyncpa [#allocation6], 0
    %s11 = scalar_lea.sflag [#allocation6], 1
    %12 = vsyncpa %s11, 0
    %13 = vsyncpa [#allocation4], 0
    %s14 = scalar_lea.sflag [#allocation4], 1
    %15 = vsyncpa %s14, 0
    loop: start=0, step=1, limit=10
    $region2: #{tpu_custom_call.1} parent=1 // loop_pre_header
      _
    $region3: #{tpu_custom_call.1} parent=1 // loop_header
      %s17 = sphi 0, %s21
      %p18 = scmp.ge.s32.totalorder %s17, 10
      %s27 = sphi 0, %s29
      %s30 = sphi 0, %s27
      %s31 = sphi 0, %s30
      %s47 = sphi 0, %s31
      %s53 = sphi 0, %s55
      %s56 = sphi 0, %s53
      %s57 = sphi 0, %s56
      %s73 = sphi 0, %s57
      %s79 = sphi 0, %s81
      %s82 = sphi 0, %s79
      %s83 = sphi 0, %s82
      %s99 = sphi 0, %s83
    $region4: #{tpu_custom_call.1} parent=1 // loop_header_branch
      %20 = sbr.rel (%p18) target = $region8
    $region5: #{tpu_custom_call.1} parent=1 // loop_body
      %s22 = ssub.s32 %s17, 1
      %s23 = ssub.s32 %s17, 2
      %s24 = sadd.s32 %s17, 1
      %s25 = ssub.s32 %s17, %s24
      %p26 = scmp.eq.s32.totalorder %s25, 0
      %s28 = sadd.s32 %s27, 1
      %s29 = scalar_select %p26, %s27, %s28
      %p32 = pneg %p26
      %p33 = scmp.eq.s32.totalorder %s17, 7
      %p34 = por %p32, %p33
      %p35 = scmp.ne.s32.totalorder %s27, %s30
      %p36 = scmp.eq.s32.totalorder %s17, 0
      %p37 = por %p35, %p36
      %p38 = scmp.ne.s32.totalorder %s27, %s30
      %p39 = scmp.eq.s32.totalorder %s22, 7
      %p40 = por %p38, %p39
      %p41 = scmp.ne.s32.totalorder %s30, %s31
      %p42 = scmp.eq.s32.totalorder %s22, 0
      %p43 = por %p41, %p42
      %p44 = scmp.ne.s32.totalorder %s30, %s31
      %p45 = scmp.eq.s32.totalorder %s23, 7
      %p46 = por %p44, %p45
      %p48 = scmp.ne.s32.totalorder %s31, %s47
      %p49 = scmp.eq.s32.totalorder %s23, 0
      %p50 = por %p48, %p49
      %s51 = ssub.s32 %s17, %s24
      %p52 = scmp.eq.s32.totalorder %s51, 0
      %s54 = sadd.s32 %s53, 1
      %s55 = scalar_select %p52, %s53, %s54
      %p58 = pneg %p52
      %p59 = scmp.eq.s32.totalorder %s17, 7
      %p60 = por %p58, %p59
      %p61 = scmp.ne.s32.totalorder %s53, %s56
      %p62 = scmp.eq.s32.totalorder %s17, 0
      %p63 = por %p61, %p62
      %p64 = scmp.ne.s32.totalorder %s53, %s56
      %p65 = scmp.eq.s32.totalorder %s22, 7
      %p66 = por %p64, %p65
      %p67 = scmp.ne.s32.totalorder %s56, %s57
      %p68 = scmp.eq.s32.totalorder %s22, 0
      %p69 = por %p67, %p68
      %p70 = scmp.ne.s32.totalorder %s56, %s57
      %p71 = scmp.eq.s32.totalorder %s23, 7
      %p72 = por %p70, %p71
      %p74 = scmp.ne.s32.totalorder %s57, %s73
      %p75 = scmp.eq.s32.totalorder %s23, 0
      %p76 = por %p74, %p75
      %s77 = ssub.s32 %s17, %s24
      %p78 = scmp.eq.s32.totalorder %s77, 0
      %s80 = sadd.s32 %s79, 1
      %s81 = scalar_select %p78, %s79, %s80
      %p84 = pneg %p78
      %p85 = scmp.eq.s32.totalorder %s17, 7
      %p86 = por %p84, %p85
      %p87 = scmp.ne.s32.totalorder %s79, %s82
      %p88 = scmp.eq.s32.totalorder %s17, 0
      %p89 = por %p87, %p88
      %p90 = scmp.ne.s32.totalorder %s79, %s82
      %p91 = scmp.eq.s32.totalorder %s22, 7
      %p92 = por %p90, %p91
      %p93 = scmp.ne.s32.totalorder %s82, %s83
      %p94 = scmp.eq.s32.totalorder %s22, 0
      %p95 = por %p93, %p94
      %p96 = scmp.ne.s32.totalorder %s82, %s83
      %p97 = scmp.eq.s32.totalorder %s23, 7
      %p98 = por %p96, %p97
      %p100 = scmp.ne.s32.totalorder %s83, %s99
      %p101 = scmp.eq.s32.totalorder %s23, 0
      %p102 = por %p100, %p101
      %p103 = scmp.le.s32.totalorder 1, %s17
      %p104 = scmp.lt.s32.totalorder %s17, 9
      %p105 = pnand %p103, %p104
      %p106 = pneg %p105
      // Predicated region
      $region9: #{tpu_custom_call.1} parent=5 // pred_check
        _
      $region10: #{tpu_custom_call.1} parent=5 // pred_check_branch
        %108 = sbr.rel (%p105) target = $region12
      $region11: #{tpu_custom_call.1} parent=5 // pred_region
        %s109 = ssub.s32 %s17, 1
      $region12: #{tpu_custom_call.1} parent=5 // pred_fallthru
        _
      %p110 = scmp.lt.s32.totalorder %s17, 8
      // Predicated region
      $region13: #{tpu_custom_call.1} parent=5 // pred_check
        %p111 = pneg %p110
      $region14: #{tpu_custom_call.1} parent=5 // pred_check_branch
        %113 = sbr.rel (%p111) target = $region16
      $region15: #{tpu_custom_call.1} parent=5 // pred_region
        // Predicated region
        $region17: #{tpu_custom_call.1} parent=15 // pred_check
          %p114 = pneg %p37
        $region18: #{tpu_custom_call.1} parent=15 // pred_check_branch
          %116 = sbr.rel (%p114) target = $region20
        $region19: #{tpu_custom_call.1} parent=15 // pred_region
          %s117 = sand.u32 %s27, 1
          %s118 = scalar_lea.sflag [#allocation3], %s117
          %s119 = sand.u32 %s27, 1
          %s120 = smul.addr %s119, 512
          %s121 = scalar_lea.vmem [#allocation2], %s120
          %s122 = smul.u32 64, %s17
          %124 = vsyncadd %s118, 0
          %s125 = smul.addr %s122, 8
          %s126 = scalar_lea.hbm %s0, %s125
          %s127 = sshll.u32 %s126, 4
          %s128 = int_to_ptr.hbm [resolvable:$true] %s127
          %s129 = sshll.u32 %s121, 4
          %s130 = int_to_ptr.vmem [resolvable:$true] %s129
          %135 = dma.hbm_to_vmem [thread:$0]  %s128, 8192, %s130, %s118, 128, 128, 8
        $region20: #{tpu_custom_call.1} parent=15 // pred_fallthru
          _
        // Predicated region
        $region21: #{tpu_custom_call.1} parent=15 // pred_check
          %p136 = pneg %p63
        $region22: #{tpu_custom_call.1} parent=15 // pred_check_branch
          %138 = sbr.rel (%p136) target = $region24
        $region23: #{tpu_custom_call.1} parent=15 // pred_region
          %s139 = sand.u32 %s53, 1
          %s140 = scalar_lea.sflag [#allocation6], %s139
          %s141 = sand.u32 %s53, 1
          %s142 = smul.addr %s141, 512
          %s143 = scalar_lea.vmem [#allocation5], %s142
          %s144 = smul.u32 64, %s17
          %146 = vsyncadd %s140, 0
          %s147 = smul.addr %s144, 8
          %s148 = scalar_lea.hbm %s1, %s147
          %s149 = sshll.u32 %s148, 4
          %s150 = int_to_ptr.hbm [resolvable:$true] %s149
          %s151 = sshll.u32 %s143, 4
          %s152 = int_to_ptr.vmem [resolvable:$true] %s151
          %157 = dma.hbm_to_vmem [thread:$0]  %s150, 8192, %s152, %s140, 128, 128, 8
        $region24: #{tpu_custom_call.1} parent=15 // pred_fallthru
          _
      $region16: #{tpu_custom_call.1} parent=5 // pred_fallthru
        _
      %p158 = scmp.le.s32.totalorder 1, %s17
      %p159 = scmp.lt.s32.totalorder %s17, 9
      %p160 = pnand %p158, %p159
      %p161 = pneg %p160
      // Predicated region
      $region25: #{tpu_custom_call.1} parent=5 // pred_check
        _
      $region26: #{tpu_custom_call.1} parent=5 // pred_check_branch
        %163 = sbr.rel (%p160) target = $region28
      $region27: #{tpu_custom_call.1} parent=5 // pred_region
        %s164 = ssub.s32 %s17, 1
        %s165 = sand.u32 %s30, 1
        %s166 = scalar_lea.sflag [#allocation3], %s165
        %s167 = sand.u32 %s30, 1
        %s168 = smul.addr %s167, 512
        %s169 = scalar_lea.vmem [#allocation2], %s168
        // Predicated region
        $region29: #{tpu_custom_call.1} parent=27 // pred_check
          %p170 = pneg %p43
        $region30: #{tpu_custom_call.1} parent=27 // pred_check_branch
          %172 = sbr.rel (%p170) target = $region32
        $region31: #{tpu_custom_call.1} parent=27 // pred_region
          %174 = dma.done %s166, 8192
        $region32: #{tpu_custom_call.1} parent=27 // pred_fallthru
          _
        %s175 = sand.u32 %s56, 1
        %s176 = scalar_lea.sflag [#allocation6], %s175
        %s177 = sand.u32 %s56, 1
        %s178 = smul.addr %s177, 512
        %s179 = scalar_lea.vmem [#allocation5], %s178
        // Predicated region
        $region33: #{tpu_custom_call.1} parent=27 // pred_check
          %p180 = pneg %p69
        $region34: #{tpu_custom_call.1} parent=27 // pred_check_branch
          %182 = sbr.rel (%p180) target = $region36
        $region35: #{tpu_custom_call.1} parent=27 // pred_region
          %184 = dma.done %s176, 8192
        $region36: #{tpu_custom_call.1} parent=27 // pred_fallthru
          _
        %s185 = sand.u32 %s30, 1
        %s186 = scalar_lea.sflag [#allocation3], %s185
        %s187 = sand.u32 %s30, 1
        %s188 = smul.addr %s187, 512
        %s189 = scalar_lea.vmem [#allocation2], %s188
        %p190 = pneg %p43
        %p191 = pneg %p40
        %s192 = sand.u32 %s56, 1
        %s193 = scalar_lea.sflag [#allocation6], %s192
        %s194 = sand.u32 %s56, 1
        %s195 = smul.addr %s194, 512
        %s196 = scalar_lea.vmem [#allocation5], %s195
        %p197 = pneg %p69
        %p198 = pneg %p66
        %p199 = pneg %p95
        %p200 = pneg %p92
        %s201 = sand.u32 %s82, 1
        %s202 = scalar_lea.sflag [#allocation4], %s201
        %s203 = sand.u32 %s82, 1
        %s204 = smul.addr %s203, 512
        %s205 = scalar_lea.vmem [#allocation7], %s204
        %s206 = smul.u32 64, %s22
        %s207 = smul.u32 64, %s22
        %s208 = smul.u32 64, %s22
        %v209 = vld [vmem:[%s169] sm:$0xff]
        %v210 = vld [vmem:[%s169 + $0x8] sm:$0xff]
        %v211 = vld [vmem:[%s169 + $0x10] sm:$0xff]
        %v212 = vld [vmem:[%s169 + $0x18] sm:$0xff]
        %v213 = vld [vmem:[%s169 + $0x20] sm:$0xff]
        %v214 = vld [vmem:[%s169 + $0x28] sm:$0xff]
        %v215 = vld [vmem:[%s169 + $0x30] sm:$0xff]
        %v216 = vld [vmem:[%s169 + $0x38] sm:$0xff]
        %v217 = vld [vmem:[%s169 + $0x40] sm:$0xff]
        %v218 = vld [vmem:[%s169 + $0x48] sm:$0xff]
        %v219 = vld [vmem:[%s169 + $0x50] sm:$0xff]
        %v220 = vld [vmem:[%s169 + $0x58] sm:$0xff]
        %v221 = vld [vmem:[%s169 + $0x60] sm:$0xff]
        %v222 = vld [vmem:[%s169 + $0x68] sm:$0xff]
        %v223 = vld [vmem:[%s169 + $0x70] sm:$0xff]
        %v224 = vld [vmem:[%s169 + $0x78] sm:$0xff]
        %v225 = vld [vmem:[%s169 + $0x80] sm:$0xff]
        %v226 = vld [vmem:[%s169 + $0x88] sm:$0xff]
        %v227 = vld [vmem:[%s169 + $0x90] sm:$0xff]
        %v228 = vld [vmem:[%s169 + $0x98] sm:$0xff]
        %v229 = vld [vmem:[%s169 + $0xa0] sm:$0xff]
        %v230 = vld [vmem:[%s169 + $0xa8] sm:$0xff]
        %v231 = vld [vmem:[%s169 + $0xb0] sm:$0xff]
        %v232 = vld [vmem:[%s169 + $0xb8] sm:$0xff]
        %v233 = vld [vmem:[%s169 + $0xc0] sm:$0xff]
        %v234 = vld [vmem:[%s169 + $0xc8] sm:$0xff]
        %v235 = vld [vmem:[%s169 + $0xd0] sm:$0xff]
        %v236 = vld [vmem:[%s169 + $0xd8] sm:$0xff]
        %v237 = vld [vmem:[%s169 + $0xe0] sm:$0xff]
        %v238 = vld [vmem:[%s169 + $0xe8] sm:$0xff]
        %v239 = vld [vmem:[%s169 + $0xf0] sm:$0xff]
        %v240 = vld [vmem:[%s169 + $0xf8] sm:$0xff]
        %v241 = vld [vmem:[%s169 + $0x100] sm:$0xff]
        %v242 = vld [vmem:[%s169 + $0x108] sm:$0xff]
        %v243 = vld [vmem:[%s169 + $0x110] sm:$0xff]
        %v244 = vld [vmem:[%s169 + $0x118] sm:$0xff]
        %v245 = vld [vmem:[%s169 + $0x120] sm:$0xff]
        %v246 = vld [vmem:[%s169 + $0x128] sm:$0xff]
        %v247 = vld [vmem:[%s169 + $0x130] sm:$0xff]
        %v248 = vld [vmem:[%s169 + $0x138] sm:$0xff]
        %v249 = vld [vmem:[%s169 + $0x140] sm:$0xff]
        %v250 = vld [vmem:[%s169 + $0x148] sm:$0xff]
        %v251 = vld [vmem:[%s169 + $0x150] sm:$0xff]
        %v252 = vld [vmem:[%s169 + $0x158] sm:$0xff]
        %v253 = vld [vmem:[%s169 + $0x160] sm:$0xff]
        %v254 = vld [vmem:[%s169 + $0x168] sm:$0xff]
        %v255 = vld [vmem:[%s169 + $0x170] sm:$0xff]
        %v256 = vld [vmem:[%s169 + $0x178] sm:$0xff]
        %v257 = vld [vmem:[%s169 + $0x180] sm:$0xff]
        %v258 = vld [vmem:[%s169 + $0x188] sm:$0xff]
        %v259 = vld [vmem:[%s169 + $0x190] sm:$0xff]
        %v260 = vld [vmem:[%s169 + $0x198] sm:$0xff]
        %v261 = vld [vmem:[%s169 + $0x1a0] sm:$0xff]
        %v262 = vld [vmem:[%s169 + $0x1a8] sm:$0xff]
        %v263 = vld [vmem:[%s169 + $0x1b0] sm:$0xff]
        %v264 = vld [vmem:[%s169 + $0x1b8] sm:$0xff]
        %v265 = vld [vmem:[%s169 + $0x1c0] sm:$0xff]
        %v266 = vld [vmem:[%s169 + $0x1c8] sm:$0xff]
        %v267 = vld [vmem:[%s169 + $0x1d0] sm:$0xff]
        %v268 = vld [vmem:[%s169 + $0x1d8] sm:$0xff]
        %v269 = vld [vmem:[%s169 + $0x1e0] sm:$0xff]
        %v270 = vld [vmem:[%s169 + $0x1e8] sm:$0xff]
        %v271 = vld [vmem:[%s169 + $0x1f0] sm:$0xff]
        %v272 = vld [vmem:[%s169 + $0x1f8] sm:$0xff]
        %v273 = vld [vmem:[%s179] sm:$0xff]
        %v274 = vld [vmem:[%s179 + $0x8] sm:$0xff]
        %v275 = vld [vmem:[%s179 + $0x10] sm:$0xff]
        %v276 = vld [vmem:[%s179 + $0x18] sm:$0xff]
        %v277 = vld [vmem:[%s179 + $0x20] sm:$0xff]
        %v278 = vld [vmem:[%s179 + $0x28] sm:$0xff]
        %v279 = vld [vmem:[%s179 + $0x30] sm:$0xff]
        %v280 = vld [vmem:[%s179 + $0x38] sm:$0xff]
        %v281 = vld [vmem:[%s179 + $0x40] sm:$0xff]
        %v282 = vld [vmem:[%s179 + $0x48] sm:$0xff]
        %v283 = vld [vmem:[%s179 + $0x50] sm:$0xff]
        %v284 = vld [vmem:[%s179 + $0x58] sm:$0xff]
        %v285 = vld [vmem:[%s179 + $0x60] sm:$0xff]
        %v286 = vld [vmem:[%s179 + $0x68] sm:$0xff]
        %v287 = vld [vmem:[%s179 + $0x70] sm:$0xff]
        %v288 = vld [vmem:[%s179 + $0x78] sm:$0xff]
        %v289 = vld [vmem:[%s179 + $0x80] sm:$0xff]
        %v290 = vld [vmem:[%s179 + $0x88] sm:$0xff]
        %v291 = vld [vmem:[%s179 + $0x90] sm:$0xff]
        %v292 = vld [vmem:[%s179 + $0x98] sm:$0xff]
        %v293 = vld [vmem:[%s179 + $0xa0] sm:$0xff]
        %v294 = vld [vmem:[%s179 + $0xa8] sm:$0xff]
        %v295 = vld [vmem:[%s179 + $0xb0] sm:$0xff]
        %v296 = vld [vmem:[%s179 + $0xb8] sm:$0xff]
        %v297 = vld [vmem:[%s179 + $0xc0] sm:$0xff]
        %v298 = vld [vmem:[%s179 + $0xc8] sm:$0xff]
        %v299 = vld [vmem:[%s179 + $0xd0] sm:$0xff]
        %v300 = vld [vmem:[%s179 + $0xd8] sm:$0xff]
        %v301 = vld [vmem:[%s179 + $0xe0] sm:$0xff]
        %v302 = vld [vmem:[%s179 + $0xe8] sm:$0xff]
        %v303 = vld [vmem:[%s179 + $0xf0] sm:$0xff]
        %v304 = vld [vmem:[%s179 + $0xf8] sm:$0xff]
        %v305 = vld [vmem:[%s179 + $0x100] sm:$0xff]
        %v306 = vld [vmem:[%s179 + $0x108] sm:$0xff]
        %v307 = vld [vmem:[%s179 + $0x110] sm:$0xff]
        %v308 = vld [vmem:[%s179 + $0x118] sm:$0xff]
        %v309 = vld [vmem:[%s179 + $0x120] sm:$0xff]
        %v310 = vld [vmem:[%s179 + $0x128] sm:$0xff]
        %v311 = vld [vmem:[%s179 + $0x130] sm:$0xff]
        %v312 = vld [vmem:[%s179 + $0x138] sm:$0xff]
        %v313 = vld [vmem:[%s179 + $0x140] sm:$0xff]
        %v314 = vld [vmem:[%s179 + $0x148] sm:$0xff]
        %v315 = vld [vmem:[%s179 + $0x150] sm:$0xff]
        %v316 = vld [vmem:[%s179 + $0x158] sm:$0xff]
        %v317 = vld [vmem:[%s179 + $0x160] sm:$0xff]
        %v318 = vld [vmem:[%s179 + $0x168] sm:$0xff]
        %v319 = vld [vmem:[%s179 + $0x170] sm:$0xff]
        %v320 = vld [vmem:[%s179 + $0x178] sm:$0xff]
        %v321 = vld [vmem:[%s179 + $0x180] sm:$0xff]
        %v322 = vld [vmem:[%s179 + $0x188] sm:$0xff]
        %v323 = vld [vmem:[%s179 + $0x190] sm:$0xff]
        %v324 = vld [vmem:[%s179 + $0x198] sm:$0xff]
        %v325 = vld [vmem:[%s179 + $0x1a0] sm:$0xff]
        %v326 = vld [vmem:[%s179 + $0x1a8] sm:$0xff]
        %v327 = vld [vmem:[%s179 + $0x1b0] sm:$0xff]
        %v328 = vld [vmem:[%s179 + $0x1b8] sm:$0xff]
        %v329 = vld [vmem:[%s179 + $0x1c0] sm:$0xff]
        %v330 = vld [vmem:[%s179 + $0x1c8] sm:$0xff]
        %v331 = vld [vmem:[%s179 + $0x1d0] sm:$0xff]
        %v332 = vld [vmem:[%s179 + $0x1d8] sm:$0xff]
        %v333 = vld [vmem:[%s179 + $0x1e0] sm:$0xff]
        %v334 = vld [vmem:[%s179 + $0x1e8] sm:$0xff]
        %v335 = vld [vmem:[%s179 + $0x1f0] sm:$0xff]
        %v336 = vld [vmem:[%s179 + $0x1f8] sm:$0xff]
        %v337 = vadd.f32 %v209, %v273
        %v338 = vadd.f32 %v210, %v274
        %v339 = vadd.f32 %v211, %v275
        %v340 = vadd.f32 %v212, %v276
        %v341 = vadd.f32 %v213, %v277
        %v342 = vadd.f32 %v214, %v278
        %v343 = vadd.f32 %v215, %v279
        %v344 = vadd.f32 %v216, %v280
        %v345 = vadd.f32 %v217, %v281
        %v346 = vadd.f32 %v218, %v282
        %v347 = vadd.f32 %v219, %v283
        %v348 = vadd.f32 %v220, %v284
        %v349 = vadd.f32 %v221, %v285
        %v350 = vadd.f32 %v222, %v286
        %v351 = vadd.f32 %v223, %v287
        %v352 = vadd.f32 %v224, %v288
        %v353 = vadd.f32 %v225, %v289
        %v354 = vadd.f32 %v226, %v290
        %v355 = vadd.f32 %v227, %v291
        %v356 = vadd.f32 %v228, %v292
        %v357 = vadd.f32 %v229, %v293
        %v358 = vadd.f32 %v230, %v294
        %v359 = vadd.f32 %v231, %v295
        %v360 = vadd.f32 %v232, %v296
        %v361 = vadd.f32 %v233, %v297
        %v362 = vadd.f32 %v234, %v298
        %v363 = vadd.f32 %v235, %v299
        %v364 = vadd.f32 %v236, %v300
        %v365 = vadd.f32 %v237, %v301
        %v366 = vadd.f32 %v238, %v302
        %v367 = vadd.f32 %v239, %v303
        %v368 = vadd.f32 %v240, %v304
        %v369 = vadd.f32 %v241, %v305
        %v370 = vadd.f32 %v242, %v306
        %v371 = vadd.f32 %v243, %v307
        %v372 = vadd.f32 %v244, %v308
        %v373 = vadd.f32 %v245, %v309
        %v374 = vadd.f32 %v246, %v310
        %v375 = vadd.f32 %v247, %v311
        %v376 = vadd.f32 %v248, %v312
        %v377 = vadd.f32 %v249, %v313
        %v378 = vadd.f32 %v250, %v314
        %v379 = vadd.f32 %v251, %v315
        %v380 = vadd.f32 %v252, %v316
        %v381 = vadd.f32 %v253, %v317
        %v382 = vadd.f32 %v254, %v318
        %v383 = vadd.f32 %v255, %v319
        %v384 = vadd.f32 %v256, %v320
        %v385 = vadd.f32 %v257, %v321
        %v386 = vadd.f32 %v258, %v322
        %v387 = vadd.f32 %v259, %v323
        %v388 = vadd.f32 %v260, %v324
        %v389 = vadd.f32 %v261, %v325
        %v390 = vadd.f32 %v262, %v326
        %v391 = vadd.f32 %v263, %v327
        %v392 = vadd.f32 %v264, %v328
        %v393 = vadd.f32 %v265, %v329
        %v394 = vadd.f32 %v266, %v330
        %v395 = vadd.f32 %v267, %v331
        %v396 = vadd.f32 %v268, %v332
        %v397 = vadd.f32 %v269, %v333
        %v398 = vadd.f32 %v270, %v334
        %v399 = vadd.f32 %v271, %v335
        %v400 = vadd.f32 %v272, %v336
        %401 = vst [vmem:[%s205] sm:$0xff] %v337
        %402 = vst [vmem:[%s205 + $0x8] sm:$0xff] %v338
        %403 = vst [vmem:[%s205 + $0x10] sm:$0xff] %v339
        %404 = vst [vmem:[%s205 + $0x18] sm:$0xff] %v340
        %405 = vst [vmem:[%s205 + $0x20] sm:$0xff] %v341
        %406 = vst [vmem:[%s205 + $0x28] sm:$0xff] %v342
        %407 = vst [vmem:[%s205 + $0x30] sm:$0xff] %v343
        %408 = vst [vmem:[%s205 + $0x38] sm:$0xff] %v344
        %409 = vst [vmem:[%s205 + $0x40] sm:$0xff] %v345
        %410 = vst [vmem:[%s205 + $0x48] sm:$0xff] %v346
        %411 = vst [vmem:[%s205 + $0x50] sm:$0xff] %v347
        %412 = vst [vmem:[%s205 + $0x58] sm:$0xff] %v348
        %413 = vst [vmem:[%s205 + $0x60] sm:$0xff] %v349
        %414 = vst [vmem:[%s205 + $0x68] sm:$0xff] %v350
        %415 = vst [vmem:[%s205 + $0x70] sm:$0xff] %v351
        %416 = vst [vmem:[%s205 + $0x78] sm:$0xff] %v352
        %417 = vst [vmem:[%s205 + $0x80] sm:$0xff] %v353
        %418 = vst [vmem:[%s205 + $0x88] sm:$0xff] %v354
        %419 = vst [vmem:[%s205 + $0x90] sm:$0xff] %v355
        %420 = vst [vmem:[%s205 + $0x98] sm:$0xff] %v356
        %421 = vst [vmem:[%s205 + $0xa0] sm:$0xff] %v357
        %422 = vst [vmem:[%s205 + $0xa8] sm:$0xff] %v358
        %423 = vst [vmem:[%s205 + $0xb0] sm:$0xff] %v359
        %424 = vst [vmem:[%s205 + $0xb8] sm:$0xff] %v360
        %425 = vst [vmem:[%s205 + $0xc0] sm:$0xff] %v361
        %426 = vst [vmem:[%s205 + $0xc8] sm:$0xff] %v362
        %427 = vst [vmem:[%s205 + $0xd0] sm:$0xff] %v363
        %428 = vst [vmem:[%s205 + $0xd8] sm:$0xff] %v364
        %429 = vst [vmem:[%s205 + $0xe0] sm:$0xff] %v365
        %430 = vst [vmem:[%s205 + $0xe8] sm:$0xff] %v366
        %431 = vst [vmem:[%s205 + $0xf0] sm:$0xff] %v367
        %432 = vst [vmem:[%s205 + $0xf8] sm:$0xff] %v368
        %433 = vst [vmem:[%s205 + $0x100] sm:$0xff] %v369
        %434 = vst [vmem:[%s205 + $0x108] sm:$0xff] %v370
        %435 = vst [vmem:[%s205 + $0x110] sm:$0xff] %v371
        %436 = vst [vmem:[%s205 + $0x118] sm:$0xff] %v372
        %437 = vst [vmem:[%s205 + $0x120] sm:$0xff] %v373
        %438 = vst [vmem:[%s205 + $0x128] sm:$0xff] %v374
        %439 = vst [vmem:[%s205 + $0x130] sm:$0xff] %v375
        %440 = vst [vmem:[%s205 + $0x138] sm:$0xff] %v376
        %441 = vst [vmem:[%s205 + $0x140] sm:$0xff] %v377
        %442 = vst [vmem:[%s205 + $0x148] sm:$0xff] %v378
        %443 = vst [vmem:[%s205 + $0x150] sm:$0xff] %v379
        %444 = vst [vmem:[%s205 + $0x158] sm:$0xff] %v380
        %445 = vst [vmem:[%s205 + $0x160] sm:$0xff] %v381
        %446 = vst [vmem:[%s205 + $0x168] sm:$0xff] %v382
        %447 = vst [vmem:[%s205 + $0x170] sm:$0xff] %v383
        %448 = vst [vmem:[%s205 + $0x178] sm:$0xff] %v384
        %449 = vst [vmem:[%s205 + $0x180] sm:$0xff] %v385
        %450 = vst [vmem:[%s205 + $0x188] sm:$0xff] %v386
        %451 = vst [vmem:[%s205 + $0x190] sm:$0xff] %v387
        %452 = vst [vmem:[%s205 + $0x198] sm:$0xff] %v388
        %453 = vst [vmem:[%s205 + $0x1a0] sm:$0xff] %v389
        %454 = vst [vmem:[%s205 + $0x1a8] sm:$0xff] %v390
        %455 = vst [vmem:[%s205 + $0x1b0] sm:$0xff] %v391
        %456 = vst [vmem:[%s205 + $0x1b8] sm:$0xff] %v392
        %457 = vst [vmem:[%s205 + $0x1c0] sm:$0xff] %v393
        %458 = vst [vmem:[%s205 + $0x1c8] sm:$0xff] %v394
        %459 = vst [vmem:[%s205 + $0x1d0] sm:$0xff] %v395
        %460 = vst [vmem:[%s205 + $0x1d8] sm:$0xff] %v396
        %461 = vst [vmem:[%s205 + $0x1e0] sm:$0xff] %v397
        %462 = vst [vmem:[%s205 + $0x1e8] sm:$0xff] %v398
        %463 = vst [vmem:[%s205 + $0x1f0] sm:$0xff] %v399
        %464 = vst [vmem:[%s205 + $0x1f8] sm:$0xff] %v400
        %s465 = sand.u32 %s82, 1
        %s466 = scalar_lea.sflag [#allocation4], %s465
        %s467 = sand.u32 %s82, 1
        %s468 = smul.addr %s467, 512
        %s469 = scalar_lea.vmem [#allocation7], %s468
        // Predicated region
        $region37: #{tpu_custom_call.1} parent=27 // pred_check
          %p470 = pneg %p92
        $region38: #{tpu_custom_call.1} parent=27 // pred_check_branch
          %472 = sbr.rel (%p470) target = $region40
        $region39: #{tpu_custom_call.1} parent=27 // pred_region
          %s473 = smul.u32 64, %s22
          %475 = vsyncadd %s466, 0
          %s476 = smul.addr %s473, 8
          %s477 = scalar_lea.hbm %s2, %s476
          %s478 = sshll.u32 %s469, 4
          %s479 = int_to_ptr.vmem [resolvable:$true] %s478
          %s480 = sshll.u32 %s477, 4
          %s481 = int_to_ptr.hbm [resolvable:$true] %s480
          %486 = dma.vmem_to_hbm [thread:$0]  %s479, 8192, %s481, %s466, 128, 128, 8
        $region40: #{tpu_custom_call.1} parent=27 // pred_fallthru
          _
      $region28: #{tpu_custom_call.1} parent=5 // pred_fallthru
        _
      %p487 = scmp.le.s32.totalorder 2, %s17
      // Predicated region
      $region41: #{tpu_custom_call.1} parent=5 // pred_check
        %p488 = pneg %p487
      $region42: #{tpu_custom_call.1} parent=5 // pred_check_branch
        %490 = sbr.rel (%p488) target = $region44
      $region43: #{tpu_custom_call.1} parent=5 // pred_region
        %s491 = ssub.s32 %s17, 2
        // Predicated region
        $region45: #{tpu_custom_call.1} parent=43 // pred_check
          %p492 = pneg %p98
        $region46: #{tpu_custom_call.1} parent=43 // pred_check_branch
          %494 = sbr.rel (%p492) target = $region48
        $region47: #{tpu_custom_call.1} parent=43 // pred_region
          %s495 = sand.u32 %s83, 1
          %s496 = scalar_lea.sflag [#allocation4], %s495
          %s497 = sand.u32 %s83, 1
          %s498 = smul.addr %s497, 512
          %s499 = scalar_lea.vmem [#allocation7], %s498
          %501 = dma.done %s496, 8192
        $region48: #{tpu_custom_call.1} parent=43 // pred_fallthru
          _
      $region44: #{tpu_custom_call.1} parent=5 // pred_fallthru
        _
    $region6: #{tpu_custom_call.1} parent=1 // loop_footer
      %s21 = sadd.s32 1, %s17
    $region7: #{tpu_custom_call.1} parent=1 // loop_footer_branch
      %16 = sbr.rel target = $region3
    $region8: #{tpu_custom_call.1} parent=1 // loop_exit
      _
    %502 = vsyncpa [#allocation3], 1
    %s503 = scalar_lea.sflag [#allocation3], 1
    %504 = vsyncpa %s503, 1
    %505 = vsyncpa [#allocation6], 1
    %s506 = scalar_lea.sflag [#allocation6], 1
    %507 = vsyncpa %s506, 1
    %508 = vsyncpa [#allocation4], 1
    %s509 = scalar_lea.sflag [#allocation4], 1
    %510 = vsyncpa %s509, 1

</llo_original>
